<compile_context>
chip_gen: v7x
topology: tpu7x:2x2x1
jax: 0.10.0
libtpu: 0.0.40
codegen_flags: <defaults>
</compile_context>

<pallas_src>
import functools

import jax
import jax.numpy as jnp
from jax import lax
from jax.experimental import pallas as pl
from jax.experimental.pallas import tpu as pltpu


def _cdiv(a, b):
    return -(-a // b)


# ----------------------------------------------------------------------------
# Streaming kernel: per-row (m, l, S, t) over the scaled-normalized scores.
# ----------------------------------------------------------------------------
def _fused_cm_kernel(tgt_ref, x_ref, f_ref,
                     m_out, l_out, s_out, t_out,
                     xs_ref, m_ref, l_ref, s_ref, t_ref,
                     *, inv_temp, n_features, n_per_split, has_pad):
    sp = pl.program_id(0)   # bank split  ("parallel": megacore sharding on v7x)
    j = pl.program_id(1)    # bank tile within the split ("arbitrary": reduction)

    # ---- init (once per split): hoist row-normalization and fold 1/temp ----
    @pl.when(j == 0)
    def _init():
        x = x_ref[...].astype(jnp.float32)                       # (B, D)
        ssq = jnp.sum(x * x, axis=1, keepdims=True)
        scale = inv_temp / jnp.maximum(jnp.sqrt(ssq), 1e-12)     # F.normalize eps
        xs_ref[...] = (x * scale).astype(xs_ref.dtype)           # bank dtype (bf16 MXU path)
        m_ref[...] = jnp.full_like(m_ref, -jnp.inf)
        l_ref[...] = jnp.zeros_like(l_ref)
        s_ref[...] = jnp.zeros_like(s_ref)
        t_ref[...] = jnp.zeros_like(t_ref)

    # ---- streaming score tile: (B, tn) = xs @ f_tile.T (NT contraction, MXU) ----
    z = lax.dot_general(xs_ref[...], f_ref[...],
                        dimension_numbers=(((1,), (1,)), ((), ())),
                        preferred_element_type=jnp.float32)
    tb, tn = z.shape
    col = (lax.broadcasted_iota(jnp.int32, (tb, tn), 1)
           + sp * n_per_split + j * tn)                          # global bank column
    # -inf mask only needed for the softmax path, and only if the bank is padded.
    zm = jnp.where(col < n_features, z, -jnp.inf) if has_pad else z

    m_prev = m_ref[...]
    m_new = jnp.maximum(m_prev, jnp.max(zm, axis=1, keepdims=True))
    alpha = jnp.exp(m_prev - m_new)
    l_ref[...] = alpha * l_ref[...] + jnp.sum(jnp.exp(zm - m_new), axis=1, keepdims=True)
    # padded bank rows are zero-filled -> z == 0 there, plain sum is exact (no mask needed)
    s_ref[...] = s_ref[...] + jnp.sum(z, axis=1, keepdims=True)
    # target column (targets_all - P == targets) always lands in the feature bank
    t_ref[...] = t_ref[...] + jnp.sum(jnp.where(col == tgt_ref[...], z, 0.0),
                                      axis=1, keepdims=True)
    m_ref[...] = m_new

    # ---- emit per-split partial stats ----
    @pl.when(j == pl.num_programs(1) - 1)
    def _fin():
        m_out[...] = m_ref[...][None]
        l_out[...] = l_ref[...][None]
        s_out[...] = s_ref[...][None]
        t_out[...] = t_ref[...][None]


# ----------------------------------------------------------------------------
# Wrapper: plan tiles, run the kernel, merge splits + prototype, smoothed CE.
# ----------------------------------------------------------------------------
def cluster_memory_loss(inputs, targets, features, prototype,
                        temp=0.05, eps=0.1, *,
                        block_n=None, n_splits=1, bank_dtype=jnp.bfloat16):
    """Forward loss of ClusterMemory.

    n_splits: use 2 on v7x so each TensorCore streams half the bank; keep 1 on v5e/v6e
    (single TC) — tiling the batch instead would re-stream the whole bank per B-tile.
    """
    B, D = inputs.shape
    N, Df = features.shape
    assert Df == D
    P = prototype.shape[1]
    inv_temp = 1.0 / float(temp)

    # ---- bank storage dtype (bf16 by default: halves the dominant HBM stream) ----
    if bank_dtype is not None and features.dtype != bank_dtype:
        features = features.astype(bank_dtype)
    feat_dtype = features.dtype
    feat_isz = jnp.dtype(feat_dtype).itemsize

    # ---- generation-aware VMEM budget (128 MiB v5e/v6e, 64 MiB v7x) ----
    try:
        vmem_cap = int(getattr(pltpu.get_tpu_info(), "vmem_capacity_bytes", 0)) or (64 << 20)
    except Exception:
        vmem_cap = 64 << 20
    vmem_budget = (vmem_cap * 3) // 4              # ~96 MiB on v5e/v6e, ~48 MiB on v7x

    # ---- N-tiling plan ----
    if block_n is None:
        block_n = 2048 if vmem_cap > (96 << 20) else 1024
        while block_n > 256 and 3 * block_n * D * feat_isz > vmem_budget // 2:
            block_n //= 2
    n_splits = max(1, int(n_splits))

    if n_splits == 1 and N <= block_n:
        tn, n_tiles, n_pad = N, 1, N
    else:
        assert block_n % 128 == 0, "block_n must be a multiple of 128 when tiling"
        tn = block_n
        # clamp n_splits so every split owns at least one real (non-padded) bank row
        while n_splits > 1:
            per = _cdiv(_cdiv(N, n_splits), tn) * tn
            if (n_splits - 1) * per < N:
                break
            n_splits -= 1
        n_tiles = _cdiv(_cdiv(N, n_splits), tn)
        n_pad = n_splits * n_tiles * tn
        if n_pad != N:
            features = jnp.pad(features, ((0, n_pad - N), (0, 0)))   # zero-fill (required)
    n_per_split = n_tiles * tn
    has_pad = n_pad != N

    targets_col = targets.astype(jnp.int32).reshape(B, 1)

    kernel = functools.partial(
        _fused_cm_kernel,
        inv_temp=inv_temp, n_features=N, n_per_split=n_per_split, has_pad=has_pad)

    # feature-bank BlockSpec: triple-buffer when there are enough tiles to hide DMA jitter
    bank_map = lambda s, j: (s * n_tiles + j, 0)
    bank_bufs = 2
    if n_tiles >= 3:
        try:
            bank_spec = pl.BlockSpec((tn, D), bank_map, pipeline_mode=pl.Buffered(3))
            bank_bufs = 3
        except (TypeError, AttributeError):
            bank_spec = pl.BlockSpec((tn, D), bank_map)
    else:
        bank_spec = pl.BlockSpec((tn, D), bank_map)

    need = (bank_bufs * tn * D * feat_isz
            + 2 * (B * D * inputs.dtype.itemsize + B * 4 + 4 * B * 4)
            + B * D * feat_isz + 4 * B * 4)
    vmem_limit = int(min(vmem_budget, max(need + (8 << 20), 32 << 20)))

    cost = pl.CostEstimate(
        flops=2 * B * n_pad * D,
        transcendentals=B * n_pad,
        bytes_accessed=n_pad * D * feat_isz + B * D * 4 + B * 4 + 4 * n_splits * B * 4)

    out_sds = jax.ShapeDtypeStruct((n_splits, B, 1), jnp.float32)
    stat_spec = pl.BlockSpec((1, B, 1), lambda s, j: (s, 0, 0))

    m_p, l_p, s_p, t_p = pl.pallas_call(
        kernel,
        out_shape=(out_sds, out_sds, out_sds, out_sds),
        grid_spec=pltpu.PrefetchScalarGridSpec(
            num_scalar_prefetch=0,
            grid=(n_splits, n_tiles),
            in_specs=[
                pl.BlockSpec((B, 1), lambda s, j: (0, 0)),   # targets   (fetched once)
                pl.BlockSpec((B, D), lambda s, j: (0, 0)),   # inputs    (fetched once)
                bank_spec,                                   # feature bank (streamed)
            ],
            out_specs=[stat_spec, stat_spec, stat_spec, stat_spec],
            scratch_shapes=[
                pltpu.VMEM((B, D), feat_dtype),    # normalized * (1/temp) inputs
                pltpu.VMEM((B, 1), jnp.float32),   # running max
                pltpu.VMEM((B, 1), jnp.float32),   # running sum-exp
                pltpu.VMEM((B, 1), jnp.float32),   # sum of bank logits
                pltpu.VMEM((B, 1), jnp.float32),   # target logit
            ]),
        compiler_params=pltpu.CompilerParams(
            dimension_semantics=("parallel", "arbitrary"),
            vmem_limit_bytes=vmem_limit),
        cost_estimate=cost,
    )(targets_col, inputs, features)

    # ---- merge per-split partials + prototype block (tiny, plain JAX) ----
    m = jnp.max(m_p, axis=0)                                     # (B, 1)
    l = jnp.sum(l_p * jnp.exp(m_p - m), axis=0)
    S = jnp.sum(s_p, axis=0)
    t = jnp.sum(t_p, axis=0)

    p = prototype.astype(jnp.float32) * inv_temp                 # (B, P) prototype / temp
    m_all = jnp.maximum(m, jnp.max(p, axis=1, keepdims=True))
    l_all = l * jnp.exp(m - m_all) + jnp.sum(jnp.exp(p - m_all), axis=1, keepdims=True)
    lse = m_all + jnp.log(l_all)
    S_all = S + jnp.sum(p, axis=1, keepdims=True)

    # ---- label-smoothed CE (fastreid fixed-epsilon branch), sum / nonzero count ----
    C = float(P + N)
    off = eps / (C - 1.0)
    loss_vec = -(off * (S_all - C * lse) + (1.0 - eps - off) * (t - lse))[:, 0]
    non_zero = jnp.maximum(jnp.sum((loss_vec != 0).astype(jnp.int32)), 1)
    return jnp.sum(loss_vec) / non_zero.astype(jnp.float32)


# ----------------------------------------------------------------------------
# pure-JAX reference (mirrors the kernel's bank-dtype quantization)
# ----------------------------------------------------------------------------
def ref_loss(inputs, targets, features, prototype, temp, eps):
    xn = inputs.astype(jnp.float32)
    xn = xn / jnp.maximum(jnp.linalg.norm(xn, axis=1, keepdims=True), 1e-12)
    xs = (xn / temp).astype(features.dtype).astype(jnp.float32)
    out = xs @ features.astype(jnp.float32).T
    proto = prototype.astype(jnp.float32) / temp
    logits = jnp.concatenate([proto, out], axis=1)
    t_all = targets + prototype.shape[1]
    logp = jax.nn.log_softmax(logits, axis=1)
    C = logits.shape[1]
    tsm = jnp.full_like(logp, eps / (C - 1))
    tsm = tsm.at[jnp.arange(logits.shape[0]), t_all].set(1.0 - eps)
    lv = -jnp.sum(tsm * logp, axis=1)
    nz = jnp.maximum(jnp.sum(lv != 0), 1)
    return jnp.sum(lv) / nz


if __name__ == "__main__":
    # ClusterMemory(num_features=D, num_samples=N, temp=0.05, momentum=0.2)
    B, D, N, P = 8, 64, 160, 8
    temp, eps = 0.05, 0.1

    key = jax.random.PRNGKey(0)
    k1, k2, k3, k4 = jax.random.split(key, 4)

    inputs = jax.random.normal(k1, (B, D), dtype=jnp.float32)
    targets = jax.random.randint(k2, (B,), 0, N, dtype=jnp.int32)
    feats = jax.random.normal(k3, (N, D), dtype=jnp.float32)
    features = feats / jnp.linalg.norm(feats, axis=1, keepdims=True)
    prototype = jax.random.normal(k4, (B, P), dtype=jnp.float32)

    # 1) default path: bf16 bank, auto tile (single tile, N <= block_n)
    loss1 = cluster_memory_loss(inputs, targets, features, prototype, temp, eps)
    jax.block_until_ready(loss1)
    exp_bf16 = ref_loss(inputs, targets, features.astype(jnp.bfloat16), prototype, temp, eps)
    assert jnp.allclose(loss1, exp_bf16, rtol=2e-3, atol=2e-3), (loss1, exp_bf16)

    # 2) f32 bank, tiled + zero-padded/masked tail (160 -> tiles of 128, pad to 256)
    loss2 = cluster_memory_loss(inputs, targets, features, prototype, temp, eps,
                                block_n=128, bank_dtype=jnp.float32)
    jax.block_until_ready(loss2)
    exp_f32 = ref_loss(inputs, targets, features, prototype, temp, eps)
    assert jnp.allclose(loss2, exp_f32, rtol=1e-4, atol=1e-4), (loss2, exp_f32)

    # 3) bank split across a leading "parallel" grid axis (v7x two-TensorCore path)
    loss3 = cluster_memory_loss(inputs, targets, features, prototype, temp, eps,
                                block_n=128, bank_dtype=jnp.float32, n_splits=2)
    jax.block_until_ready(loss3)
    assert jnp.allclose(loss3, exp_f32, rtol=1e-4, atol=1e-4), (loss3, exp_f32)

    print("KERNEL_OK")
</pallas_src>

<mosaic_0001>
module attributes {stable_mosaic.version = 11 : i64} {
  func.func @_fused_cm_kernel(%arg0: i32, %arg1: i32, %arg2: memref<8x1xi32, #tpu.memory_space<vmem>>, %arg3: memref<8x64xf32, #tpu.memory_space<vmem>>, %arg4: memref<160x64xbf16, #tpu.memory_space<vmem>>, %arg5: memref<1x8x1xf32, #tpu.memory_space<vmem>>, %arg6: memref<1x8x1xf32, #tpu.memory_space<vmem>>, %arg7: memref<1x8x1xf32, #tpu.memory_space<vmem>>, %arg8: memref<1x8x1xf32, #tpu.memory_space<vmem>>, %arg9: memref<8x64xbf16, #tpu.memory_space<vmem>>, %arg10: memref<8x1xf32, #tpu.memory_space<vmem>>, %arg11: memref<8x1xf32, #tpu.memory_space<vmem>>, %arg12: memref<8x1xf32, #tpu.memory_space<vmem>>, %arg13: memref<8x1xf32, #tpu.memory_space<vmem>>) attributes {dimension_semantics = [#tpu.dimension_semantics<parallel>, #tpu.dimension_semantics<arbitrary>], iteration_bounds = array<i64: 1, 1>, scalar_prefetch = 0 : i64, scratch_operands = 5 : i64, tpu.core_type = #tpu.core_type<tc>, window_params = [{pipeline_mode = #tpu.pipeline_mode<synchronous>, transform_indices = @transform_0, window_bounds = array<i64: 8, 1>}, {pipeline_mode = #tpu.pipeline_mode<synchronous>, transform_indices = @transform_1, window_bounds = array<i64: 8, 64>}, {transform_indices = @transform_2, window_bounds = array<i64: 160, 64>}, {transform_indices = @transform_3, window_bounds = array<i64: 1, 8, 1>}, {transform_indices = @transform_4, window_bounds = array<i64: 1, 8, 1>}, {transform_indices = @transform_5, window_bounds = array<i64: 1, 8, 1>}, {transform_indices = @transform_6, window_bounds = array<i64: 1, 8, 1>}]} {
    %c0_i32 = arith.constant 0 : i32
    %0 = arith.cmpi eq, %arg1, %c0_i32 : i32
    %1 = arith.extui %0 : i1 to i32
    %c0_i32_0 = arith.constant 0 : i32
    %2 = arith.cmpi ne, %1, %c0_i32_0 : i32
    scf.if %2 {
      %c0_30 = arith.constant 0 : index
      %c0_31 = arith.constant 0 : index
      %47 = vector.load %arg3[%c0_30, %c0_31] : memref<8x64xf32, #tpu.memory_space<vmem>>, vector<8x64xf32>
      %48 = arith.mulf %47, %47 : vector<8x64xf32>
      %cst_32 = arith.constant dense<0.000000e+00> : vector<8xf32>
      %49 = vector.multi_reduction <add>, %48, %cst_32 [1] : vector<8x64xf32> to vector<8xf32>
      %50 = vector.shape_cast %49 : vector<8xf32> to vector<8x1xf32>
      %51 = math.sqrt %50 : vector<8x1xf32>
      %cst_33 = arith.constant 9.99999996E-13 : f32
      %52 = vector.broadcast %cst_33 : f32 to vector<8x1xf32>
      %53 = arith.maximumf %51, %52 : vector<8x1xf32>
      %cst_34 = arith.constant 2.000000e+01 : f32
      %54 = vector.broadcast %cst_34 : f32 to vector<8x1xf32>
      %55 = arith.divf %54, %53 : vector<8x1xf32>
      %56 = vector.broadcast %55 : vector<8x1xf32> to vector<8x64xf32>
      %57 = arith.mulf %47, %56 : vector<8x64xf32>
      %58 = arith.truncf %57 : vector<8x64xf32> to vector<8x64xbf16>
      %c0_35 = arith.constant 0 : index
      %c0_36 = arith.constant 0 : index
      %59 = vector.load %arg9[%c0_35, %c0_36] : memref<8x64xbf16, #tpu.memory_space<vmem>>, vector<8x64xbf16>
      tpu.vector_store %arg9[%c0_35, %c0_36], %58 {strides = array<i32>} : memref<8x64xbf16, #tpu.memory_space<vmem>>, vector<8x64xbf16>,
      %cst_37 = arith.constant 0xFF800000 : f32
      %60 = vector.broadcast %cst_37 : f32 to vector<8x1xf32>
      %c0_38 = arith.constant 0 : index
      %c0_39 = arith.constant 0 : index
      %61 = vector.load %arg10[%c0_38, %c0_39] : memref<8x1xf32, #tpu.memory_space<vmem>>, vector<8x1xf32>
      tpu.vector_store %arg10[%c0_38, %c0_39], %60 {strides = array<i32>} : memref<8x1xf32, #tpu.memory_space<vmem>>, vector<8x1xf32>,
      %cst_40 = arith.constant 0.000000e+00 : f32
      %62 = vector.broadcast %cst_40 : f32 to vector<8x1xf32>
      %c0_41 = arith.constant 0 : index
      %c0_42 = arith.constant 0 : index
      %63 = vector.load %arg11[%c0_41, %c0_42] : memref<8x1xf32, #tpu.memory_space<vmem>>, vector<8x1xf32>
      tpu.vector_store %arg11[%c0_41, %c0_42], %62 {strides = array<i32>} : memref<8x1xf32, #tpu.memory_space<vmem>>, vector<8x1xf32>,
      %cst_43 = arith.constant 0.000000e+00 : f32
      %64 = vector.broadcast %cst_43 : f32 to vector<8x1xf32>
      %c0_44 = arith.constant 0 : index
      %c0_45 = arith.constant 0 : index
      %65 = vector.load %arg12[%c0_44, %c0_45] : memref<8x1xf32, #tpu.memory_space<vmem>>, vector<8x1xf32>
      tpu.vector_store %arg12[%c0_44, %c0_45], %64 {strides = array<i32>} : memref<8x1xf32, #tpu.memory_space<vmem>>, vector<8x1xf32>,
      %cst_46 = arith.constant 0.000000e+00 : f32
      %66 = vector.broadcast %cst_46 : f32 to vector<8x1xf32>
      %c0_47 = arith.constant 0 : index
      %c0_48 = arith.constant 0 : index
      %67 = vector.load %arg13[%c0_47, %c0_48] : memref<8x1xf32, #tpu.memory_space<vmem>>, vector<8x1xf32>
      tpu.vector_store %arg13[%c0_47, %c0_48], %66 {strides = array<i32>} : memref<8x1xf32, #tpu.memory_space<vmem>>, vector<8x1xf32>,
    } else {
    }
    %c0 = arith.constant 0 : index
    %c0_1 = arith.constant 0 : index
    %3 = vector.load %arg9[%c0, %c0_1] : memref<8x64xbf16, #tpu.memory_space<vmem>>, vector<8x64xbf16>
    %c0_2 = arith.constant 0 : index
    %c0_3 = arith.constant 0 : index
    %4 = vector.load %arg4[%c0_2, %c0_3] : memref<160x64xbf16, #tpu.memory_space<vmem>>, vector<160x64xbf16>
    %cst = arith.constant dense<0.000000e+00> : vector<8x160xf32>
    %5 = tpu.matmul %3, %4, %cst {dimension_numbers = #tpu.dot_dimension_numbers<[1], [1], [0], [0], [0, 0, 1, 0], [], []>} : vector<8x64xbf16>, vector<160x64xbf16>, vector<8x160xf32> -> vector<8x160xf32>
    %6 = tpu.iota {dimensions = array<i32: 1>} : vector<8x160xi32>
    %c160_i32 = arith.constant 160 : i32
    %7 = arith.muli %arg0, %c160_i32 : i32
    %8 = vector.broadcast %7 : i32 to vector<8x160xi32>
    %9 = arith.addi %6, %8 : vector<8x160xi32>
    %c160_i32_4 = arith.constant 160 : i32
    %10 = arith.muli %arg1, %c160_i32_4 : i32
    %11 = vector.broadcast %10 : i32 to vector<8x160xi32>
    %12 = arith.addi %9, %11 : vector<8x160xi32>
    %c0_5 = arith.constant 0 : index
    %c0_6 = arith.constant 0 : index
    %13 = vector.load %arg10[%c0_5, %c0_6] : memref<8x1xf32, #tpu.memory_space<vmem>>, vector<8x1xf32>
    %cst_7 = arith.constant dense<0xFF800000> : vector<8xf32>
    %14 = vector.multi_reduction <maximumf>, %5, %cst_7 [1] : vector<8x160xf32> to vector<8xf32>
    %15 = vector.shape_cast %14 : vector<8xf32> to vector<8x1xf32>
    %16 = arith.maximumf %13, %15 : vector<8x1xf32>
    %17 = arith.subf %13, %16 : vector<8x1xf32>
    %18 = math.exp %17 : vector<8x1xf32>
    %c0_8 = arith.constant 0 : index
    %c0_9 = arith.constant 0 : index
    %19 = vector.load %arg11[%c0_8, %c0_9] : memref<8x1xf32, #tpu.memory_space<vmem>>, vector<8x1xf32>
    %20 = arith.mulf %18, %19 : vector<8x1xf32>
    %21 = vector.broadcast %16 : vector<8x1xf32> to vector<8x160xf32>
    %22 = arith.subf %5, %21 : vector<8x160xf32>
    %23 = math.exp %22 : vector<8x160xf32>
    %cst_10 = arith.constant dense<0.000000e+00> : vector<8xf32>
    %24 = vector.multi_reduction <add>, %23, %cst_10 [1] : vector<8x160xf32> to vector<8xf32>
    %25 = vector.shape_cast %24 : vector<8xf32> to vector<8x1xf32>
    %26 = arith.addf %20, %25 : vector<8x1xf32>
    %c0_11 = arith.constant 0 : index
    %c0_12 = arith.constant 0 : index
    %27 = vector.load %arg11[%c0_11, %c0_12] : memref<8x1xf32, #tpu.memory_space<vmem>>, vector<8x1xf32>
    tpu.vector_store %arg11[%c0_11, %c0_12], %26 {strides = array<i32>} : memref<8x1xf32, #tpu.memory_space<vmem>>, vector<8x1xf32>,
    %c0_13 = arith.constant 0 : index
    %c0_14 = arith.constant 0 : index
    %28 = vector.load %arg12[%c0_13, %c0_14] : memref<8x1xf32, #tpu.memory_space<vmem>>, vector<8x1xf32>
    %cst_15 = arith.constant dense<0.000000e+00> : vector<8xf32>
    %29 = vector.multi_reduction <add>, %5, %cst_15 [1] : vector<8x160xf32> to vector<8xf32>
    %30 = vector.shape_cast %29 : vector<8xf32> to vector<8x1xf32>
    %31 = arith.addf %28, %30 : vector<8x1xf32>
    %c0_16 = arith.constant 0 : index
    %c0_17 = arith.constant 0 : index
    %32 = vector.load %arg12[%c0_16, %c0_17] : memref<8x1xf32, #tpu.memory_space<vmem>>, vector<8x1xf32>
    tpu.vector_store %arg12[%c0_16, %c0_17], %31 {strides = array<i32>} : memref<8x1xf32, #tpu.memory_space<vmem>>, vector<8x1xf32>,
    %c0_18 = arith.constant 0 : index
    %c0_19 = arith.constant 0 : index
    %33 = vector.load %arg13[%c0_18, %c0_19] : memref<8x1xf32, #tpu.memory_space<vmem>>, vector<8x1xf32>
    %c0_20 = arith.constant 0 : index
    %c0_21 = arith.constant 0 : index
    %34 = vector.load %arg2[%c0_20, %c0_21] : memref<8x1xi32, #tpu.memory_space<vmem>>, vector<8x1xi32>
    %35 = vector.broadcast %34 : vector<8x1xi32> to vector<8x160xi32>
    %36 = arith.cmpi eq, %12, %35 : vector<8x160xi32>
    %cst_22 = arith.constant 0.000000e+00 : f32
    %37 = vector.broadcast %cst_22 : f32 to vector<8x160xf32>
    %38 = arith.select %36, %5, %37 : vector<8x160xi1>, vector<8x160xf32>
    %cst_23 = arith.constant dense<0.000000e+00> : vector<8xf32>
    %39 = vector.multi_reduction <add>, %38, %cst_23 [1] : vector<8x160xf32> to vector<8xf32>
    %40 = vector.shape_cast %39 : vector<8xf32> to vector<8x1xf32>
    %41 = arith.addf %33, %40 : vector<8x1xf32>
    %c0_24 = arith.constant 0 : index
    %c0_25 = arith.constant 0 : index
    %42 = vector.load %arg13[%c0_24, %c0_25] : memref<8x1xf32, #tpu.memory_space<vmem>>, vector<8x1xf32>
    tpu.vector_store %arg13[%c0_24, %c0_25], %41 {strides = array<i32>} : memref<8x1xf32, #tpu.memory_space<vmem>>, vector<8x1xf32>,
    %c0_26 = arith.constant 0 : index
    %c0_27 = arith.constant 0 : index
    %43 = vector.load %arg10[%c0_26, %c0_27] : memref<8x1xf32, #tpu.memory_space<vmem>>, vector<8x1xf32>
    tpu.vector_store %arg10[%c0_26, %c0_27], %16 {strides = array<i32>} : memref<8x1xf32, #tpu.memory_space<vmem>>, vector<8x1xf32>,
    %c0_i32_28 = arith.constant 0 : i32
    %44 = arith.cmpi eq, %arg1, %c0_i32_28 : i32
    %45 = arith.extui %44 : i1 to i32
    %c0_i32_29 = arith.constant 0 : i32
    %46 = arith.cmpi ne, %45, %c0_i32_29 : i32
    scf.if %46 {
      %c0_30 = arith.constant 0 : index
      %c0_31 = arith.constant 0 : index
      %47 = vector.load %arg10[%c0_30, %c0_31] : memref<8x1xf32, #tpu.memory_space<vmem>>, vector<8x1xf32>
      %48 = vector.shape_cast %47 : vector<8x1xf32> to vector<1x8x1xf32>
      %c0_32 = arith.constant 0 : index
      %c0_33 = arith.constant 0 : index
      %c0_34 = arith.constant 0 : index
      %49 = vector.load %arg5[%c0_32, %c0_33, %c0_34] : memref<1x8x1xf32, #tpu.memory_space<vmem>>, vector<1x8x1xf32>
      tpu.vector_store %arg5[%c0_32, %c0_33, %c0_34], %48 {strides = array<i32>} : memref<1x8x1xf32, #tpu.memory_space<vmem>>, vector<1x8x1xf32>,
      %c0_35 = arith.constant 0 : index
      %c0_36 = arith.constant 0 : index
      %50 = vector.load %arg11[%c0_35, %c0_36] : memref<8x1xf32, #tpu.memory_space<vmem>>, vector<8x1xf32>
      %51 = vector.shape_cast %50 : vector<8x1xf32> to vector<1x8x1xf32>
      %c0_37 = arith.constant 0 : index
      %c0_38 = arith.constant 0 : index
      %c0_39 = arith.constant 0 : index
      %52 = vector.load %arg6[%c0_37, %c0_38, %c0_39] : memref<1x8x1xf32, #tpu.memory_space<vmem>>, vector<1x8x1xf32>
      tpu.vector_store %arg6[%c0_37, %c0_38, %c0_39], %51 {strides = array<i32>} : memref<1x8x1xf32, #tpu.memory_space<vmem>>, vector<1x8x1xf32>,
      %c0_40 = arith.constant 0 : index
      %c0_41 = arith.constant 0 : index
      %53 = vector.load %arg12[%c0_40, %c0_41] : memref<8x1xf32, #tpu.memory_space<vmem>>, vector<8x1xf32>
      %54 = vector.shape_cast %53 : vector<8x1xf32> to vector<1x8x1xf32>
      %c0_42 = arith.constant 0 : index
      %c0_43 = arith.constant 0 : index
      %c0_44 = arith.constant 0 : index
      %55 = vector.load %arg7[%c0_42, %c0_43, %c0_44] : memref<1x8x1xf32, #tpu.memory_space<vmem>>, vector<1x8x1xf32>
      tpu.vector_store %arg7[%c0_42, %c0_43, %c0_44], %54 {strides = array<i32>} : memref<1x8x1xf32, #tpu.memory_space<vmem>>, vector<1x8x1xf32>,
      %c0_45 = arith.constant 0 : index
      %c0_46 = arith.constant 0 : index
      %56 = vector.load %arg13[%c0_45, %c0_46] : memref<8x1xf32, #tpu.memory_space<vmem>>, vector<8x1xf32>
      %57 = vector.shape_cast %56 : vector<8x1xf32> to vector<1x8x1xf32>
      %c0_47 = arith.constant 0 : index
      %c0_48 = arith.constant 0 : index
      %c0_49 = arith.constant 0 : index
      %58 = vector.load %arg8[%c0_47, %c0_48, %c0_49] : memref<1x8x1xf32, #tpu.memory_space<vmem>>, vector<1x8x1xf32>
      tpu.vector_store %arg8[%c0_47, %c0_48, %c0_49], %57 {strides = array<i32>} : memref<1x8x1xf32, #tpu.memory_space<vmem>>, vector<1x8x1xf32>,
    } else {
    }
    return
  }
  func.func @transform_0(%arg0: i32, %arg1: i32) -> (i32, i32) {
    %c0_i32 = arith.constant 0 : i32
    %c0_i32_0 = arith.constant 0 : i32
    %c0_i32_1 = arith.constant 0 : i32
    return %c0_i32, %c0_i32_0 : i32, i32
  }
  func.func @transform_1(%arg0: i32, %arg1: i32) -> (i32, i32) {
    %c0_i32 = arith.constant 0 : i32
    %c0_i32_0 = arith.constant 0 : i32
    %c0_i32_1 = arith.constant 0 : i32
    return %c0_i32, %c0_i32_0 : i32, i32
  }
  func.func @transform_2(%arg0: i32, %arg1: i32) -> (i32, i32) {
    %c1_i32 = arith.constant 1 : i32
    %0 = arith.muli %arg0, %c1_i32 : i32
    %1 = arith.addi %0, %arg1 : i32
    %c0_i32 = arith.constant 0 : i32
    %c0_i32_0 = arith.constant 0 : i32
    return %1, %c0_i32 : i32, i32
  }
  func.func @transform_3(%arg0: i32, %arg1: i32) -> (i32, i32, i32) {
    %c0_i32 = arith.constant 0 : i32
    %c0_i32_0 = arith.constant 0 : i32
    %c0_i32_1 = arith.constant 0 : i32
    return %arg0, %c0_i32, %c0_i32_0 : i32, i32, i32
  }
  func.func @transform_4(%arg0: i32, %arg1: i32) -> (i32, i32, i32) {
    %c0_i32 = arith.constant 0 : i32
    %c0_i32_0 = arith.constant 0 : i32
    %c0_i32_1 = arith.constant 0 : i32
    return %arg0, %c0_i32, %c0_i32_0 : i32, i32, i32
  }
  func.func @transform_5(%arg0: i32, %arg1: i32) -> (i32, i32, i32) {
    %c0_i32 = arith.constant 0 : i32
    %c0_i32_0 = arith.constant 0 : i32
    %c0_i32_1 = arith.constant 0 : i32
    return %arg0, %c0_i32, %c0_i32_0 : i32, i32, i32
  }
  func.func @transform_6(%arg0: i32, %arg1: i32) -> (i32, i32, i32) {
    %c0_i32 = arith.constant 0 : i32
    %c0_i32_0 = arith.constant 0 : i32
    %c0_i32_1 = arith.constant 0 : i32
    return %arg0, %c0_i32, %c0_i32_0 : i32, i32, i32
  }
}

</mosaic_0001>

<llo_original>
// kernel: tpu_custom_call.1
$region0: #{tpu_custom_call.1}
  #allocation0 [shape = 'u32[]', space=smem, size = 0x4, offset = 0x4, fixed_abs, tag = 'smem constant byte address 0x4 - core index']
  #allocation1 [shape = 'u32[144,128]{1,0:T(1,128)}', space=vmem, size = 0x12000, scoped, tag = 'internal scratch']
  #allocation2 [shape = 'bf16[8,64]{1,0:T(8,128)(2,1)}', space=vmem, size = 0x800, scoped, tag = 'scratch operand']
  #allocation3 [shape = 'f32[8,1]{1,0:T(8,128)}', space=vmem, size = 0x1000, scoped, tag = 'scratch operand']
  #allocation4 [shape = 'f32[8,1]{1,0:T(8,128)}', space=vmem, size = 0x1000, scoped, tag = 'scratch operand']
  #allocation5 [shape = 'f32[8,1]{1,0:T(8,128)}', space=vmem, size = 0x1000, scoped, tag = 'scratch operand']
  #allocation6 [shape = 'f32[8,1]{1,0:T(8,128)}', space=vmem, size = 0x1000, scoped, tag = 'scratch operand']
  %s0 = inlined_call_operand.vmem [shape: s32[8,1], index: 0, kind: input, shape index: {}]
  %s1 = inlined_call_operand.vmem [shape: f32[8,64], index: 1, kind: input, shape index: {}]
  %s2 = inlined_call_operand.vmem [shape: bf16[160,64], index: 2, kind: input, shape index: {}]
  %s3 = inlined_call_operand.vmem [shape: f32[1,8,1], index: 3, kind: output, shape index: {0}]
  %s4 = inlined_call_operand.vmem [shape: f32[1,8,1], index: 4, kind: output, shape index: {1}]
  %s5 = inlined_call_operand.vmem [shape: f32[1,8,1], index: 5, kind: output, shape index: {2}]
  %s6 = inlined_call_operand.vmem [shape: f32[1,8,1], index: 6, kind: output, shape index: {3}]
  %7 = xla_tuple %s3, %s4, %s5, %s6
  %s8 = sld [smem:[#allocation0]]
  $region54: #{tpu_custom_call.1} parent=0
    _
  %s10 = ssub.s32 1, %s8
  %s11 = scalar_select 0, %s10, %s8
  // Predicated region
  $region2: #{tpu_custom_call.1} parent=0 // pred_check
    _
  $region3: #{tpu_custom_call.1} parent=0 // pred_check_branch
    %13 = sbr.rel (0) target = $region5
  $region4: #{tpu_custom_call.1} parent=0 // pred_region
    _
  $region5: #{tpu_custom_call.1} parent=0 // pred_fallthru
    _
  // Predicated region
  $region6: #{tpu_custom_call.1} parent=0 // pred_check
    _
  $region7: #{tpu_custom_call.1} parent=0 // pred_check_branch
    %15 = sbr.rel (0) target = $region9
  $region8: #{tpu_custom_call.1} parent=0 // pred_region
    _
  $region9: #{tpu_custom_call.1} parent=0 // pred_fallthru
    _
  // Predicated region
  $region10: #{tpu_custom_call.1} parent=0 // pred_check
    _
  $region11: #{tpu_custom_call.1} parent=0 // pred_check_branch
    %17 = sbr.rel (0) target = $region13
  $region12: #{tpu_custom_call.1} parent=0 // pred_region
    %s18 = sadd.s32 0, 0
    %s19 = smul.u32 20, %s18
    %p20 = scmp.lt.s32.totalorder %s19, 19
    %s21 = scalar_select %p20, %s19, 19
    %s22 = smul.addr %s21, 4
    %s23 = scalar_lea.vmem %s2, %s22
    %s24 = sadd.s32 0, 0
    %s25 = smul.u32 20, %s24
  $region13: #{tpu_custom_call.1} parent=0 // pred_fallthru
    _
  %s26 = sadd.s32 0, 0
  %s27 = smul.u32 20, %s26
  %p28 = scmp.lt.s32.totalorder %s27, 19
  %s29 = scalar_select %p28, %s27, 19
  %s30 = smul.addr %s29, 4
  %s31 = scalar_lea.vmem %s2, %s30
  %s32 = sadd.s32 0, 0
  %s33 = smul.u32 20, %s32
  %p34 = scmp.lt.s32.totalorder %s33, 19
  %s35 = scalar_select %p34, %s33, 19
  %s36 = smul.addr %s35, 4
  %s37 = scalar_lea.vmem %s2, %s36
  %s38 = sadd.s32 0, 0
  %s39 = smul.u32 20, %s38
  %p41 = scmp.eq.s32.totalorder 0, 0
  // Predicated region
  $region14: #{tpu_custom_call.1} parent=0 // pred_check
    %p42 = pneg %p41
  $region15: #{tpu_custom_call.1} parent=0 // pred_check_branch
    %44 = sbr.rel (%p42) target = $region17
  $region16: #{tpu_custom_call.1} parent=0 // pred_region
    %v45 = vld [vmem:[%s1] sm:$0xff]
    %v46 = vmul.f32 %v45, %v45
    %vm47 = vcmask 523264
    %v48 = vsel %vm47, %v46, 0.0
    %49 = vadd.xlane.f32.xlu0 %v48
    %v50 = vpop.xlane.xlu0 %49
    %v51 = vrsqrt.pop %v50
    %v52 = vmul.f32 %v50, %v51
    %vm53 = vcmp.eq.f32.partialorder %v50, inf
    %v54 = vsel %vm53, %v50, %v52
    %vm55 = vcmp.eq.f32.partialorder %v50, 0.0
    %v56 = vand.u32 %v50, 2147483648
    %v57 = vsel %vm55, %v56, %v54
    %v58 = vmax.f32 %v57, 1e-12
    %v59 = vrcp.pop %v58
    %v60 = vmul.f32 20.0, %v59
    %v61 = vmul.f32 %v45, %v60
    %v62 = vpack.c.bf16 %v61, %v61
    %vm63 = vcmask 519168
    %64 = vst.msk [vmem:[#allocation2] sm:$0xf] %vm63, %v62
    %vm65 = vcmask 7168
    %66 = vst.msk [vmem:[#allocation3] sm:$0xff] %vm65, -inf
    %67 = vst.msk [vmem:[#allocation4] sm:$0xff] %vm65, 0.0
    %68 = vst.msk [vmem:[#allocation5] sm:$0xff] %vm65, 0.0
    %69 = vst.msk [vmem:[#allocation6] sm:$0xff] %vm65, 0.0
  $region17: #{tpu_custom_call.1} parent=0 // pred_fallthru
    _
  %v70 = vld [vmem:[#allocation2] sm:$0xf]
  %v71 = vld [vmem:[%s37] sm:$0xf]
  %v72 = vld [vmem:[%s37 + $0x4] sm:$0xf]
  %v73 = vld [vmem:[%s37 + $0x8] sm:$0xf]
  %v74 = vld [vmem:[%s37 + $0xc] sm:$0xf]
  %v75 = vld [vmem:[%s37 + $0x10] sm:$0xf]
  %v76 = vld [vmem:[%s37 + $0x14] sm:$0xf]
  %v77 = vld [vmem:[%s37 + $0x18] sm:$0xf]
  %v78 = vld [vmem:[%s37 + $0x1c] sm:$0xf]
  %v79 = vld [vmem:[%s37 + $0x20] sm:$0xf]
  %v80 = vld [vmem:[%s37 + $0x24] sm:$0xf]
  %v81 = vld [vmem:[%s37 + $0x28] sm:$0xf]
  %v82 = vld [vmem:[%s37 + $0x2c] sm:$0xf]
  %v83 = vld [vmem:[%s37 + $0x30] sm:$0xf]
  %v84 = vld [vmem:[%s37 + $0x34] sm:$0xf]
  %v85 = vld [vmem:[%s37 + $0x38] sm:$0xf]
  %v86 = vld [vmem:[%s37 + $0x3c] sm:$0xf]
  %v87 = vld [vmem:[%s37 + $0x40] sm:$0xf]
  %v88 = vld [vmem:[%s37 + $0x44] sm:$0xf]
  %v89 = vld [vmem:[%s37 + $0x48] sm:$0xf]
  %v90 = vld [vmem:[%s37 + $0x4c] sm:$0xf]
  %v111 = vunpack.c.l.b16 %v71
  %v112 = vunpack.c.l.b16 %v72
  %v113 = vunpack.c.l.b16 %v73
  %v114 = vunpack.c.l.b16 %v74
  %v115 = vunpack.c.l.b16 %v75
  %v116 = vunpack.c.l.b16 %v76
  %v117 = vunpack.c.l.b16 %v77
  %v118 = vunpack.c.l.b16 %v78
  %v119 = vunpack.c.l.b16 %v79
  %v120 = vunpack.c.l.b16 %v80
  %v121 = vunpack.c.l.b16 %v81
  %v122 = vunpack.c.l.b16 %v82
  %v123 = vunpack.c.l.b16 %v83
  %v124 = vunpack.c.l.b16 %v84
  %v125 = vunpack.c.l.b16 %v85
  %v126 = vunpack.c.l.b16 %v86
  %v127 = vunpack.c.l.b16 %v87
  %v128 = vunpack.c.l.b16 %v88
  %v129 = vunpack.c.l.b16 %v89
  %v130 = vunpack.c.l.b16 %v90
  %v131 = vpack.c.b16 %v112, %v111
  %v132 = vpack.c.b16 %v114, %v113
  %v133 = vpack.c.b16 %v116, %v115
  %v134 = vpack.c.b16 %v118, %v117
  %v135 = vpack.c.b16 %v120, %v119
  %v136 = vpack.c.b16 %v122, %v121
  %v137 = vpack.c.b16 %v124, %v123
  %v138 = vpack.c.b16 %v126, %v125
  %v139 = vpack.c.b16 %v128, %v127
  %v140 = vpack.c.b16 %v130, %v129
  %vm141 = vcmask 523264
  %v143 = vsel %vm141, %v70, 0
  %v146 = vsel %vm141, %v131, 0
  %v149 = vsel %vm141, %v132, 0
  %v152 = vsel %vm141, %v133, 0
  %v155 = vsel %vm141, %v134, 0
  %v158 = vsel %vm141, %v135, 0
  %v161 = vsel %vm141, %v136, 0
  %v164 = vsel %vm141, %v137, 0
  %v167 = vsel %vm141, %v138, 0
  %v170 = vsel %vm141, %v139, 0
  %v173 = vsel %vm141, %v140, 0
  %175 = vmatprep.subr.bf16.mxu0 0
  %176 = vmatpush1.bf16.xpose.msra.mxu0 %v146
  %177 = vmatprep.subr.bf16.mxu0 0
  %178 = vmatpush1.bf16.xpose.msra.mxu0 %v149
  %179 = vmatprep.subr.bf16.mxu0 0
  %180 = vmatpush1.bf16.xpose.msra.mxu0 %v152
  %181 = vmatprep.subr.bf16.mxu0 0
  %182 = vmatpush1.bf16.xpose.msra.mxu0 %v155
  %183 = vmatprep.subr.bf16.mxu0 0
  %184 = vmatpush1.bf16.xpose.msra.mxu0 %v158
  %185 = vmatprep.subr.bf16.mxu0 0
  %186 = vmatpush1.bf16.xpose.msra.mxu0 %v161
  %187 = vmatprep.subr.bf16.mxu0 0
  %188 = vmatpush1.bf16.xpose.msra.mxu0 %v164
  %189 = vmatprep.subr.bf16.mxu0 0
  %190 = vmatpush1.bf16.xpose.msra.mxu0 %v167
  %191 = vmatprep.subr.bf16.mxu0 0
  %192 = vmatpush1.bf16.xpose.msra.mxu0 %v170
  %193 = vmatprep.subr.bf16.mxu0 0
  %194 = vmatpush1.bf16.xpose.msra.mxu0 %v173
  %195 = vmatprep.subr.bf16.mxu0 0
  %196 = vmatpush1.bf16.xpose.msra.mxu0 0
  %197 = vmatprep.subr.bf16.mxu0 0
  %198 = vmatpush1.bf16.xpose.msra.mxu0 0
  %199 = vmatprep.subr.bf16.mxu0 0
  %200 = vmatpush1.bf16.xpose.msra.mxu0 0
  %201 = vmatprep.subr.bf16.mxu0 0
  %202 = vmatpush1.bf16.xpose.msra.mxu0 0
  %203 = vmatprep.subr.bf16.mxu0 0
  %204 = vmatpush1.bf16.xpose.msra.mxu0 0
  %205 = vmatprep.subr.bf16.mxu0 0
  %206 = vmatpush1.bf16.xpose.msra.mxu0 0
  %207 = vmatprep.mubr.bf16.mxu0 0
  %208 = vmatmul.mubr.bf16.gmra.mrb[0].mxu0 %v143
  %v209 = vpop.f32.mrb[0].mxu0
  %v210 = vadd.f32 0.0, %v209
  %v211 = vpop.f32.mrb[0].mxu0
  %v212 = vadd.f32 0.0, %v211
  %v213 = vpop.f32.mrb[0].mxu0
  %v214 = vpop.f32.mrb[0].mxu0
  %215 = vdwg.mxu0
  %v216 = vlaneseq
  %v217 = vand.u32 %v216, 127
  %v218 = vadd.s32 %v217, 128
  %s219 = smul.u32 0, 160
  %v220 = vstv %s219
  %v221 = vadd.s32 %v217, %v220
  %v222 = vadd.s32 %v218, %v220
  %s223 = smul.u32 0, 160
  %v224 = vstv %s223
  %v225 = vadd.s32 %v221, %v224
  %v226 = vadd.s32 %v222, %v224
  %v227 = vld [vmem:[#allocation3] sm:$0xff]
  %vm228 = vcmask 261120
  %v229 = vsel %vm228, %v212, -inf
  %v230 = vmax.f32 %v210, %v229
  %231 = vmax.xlane.f32.xlu0 %v230
  %v232 = vpop.xlane.xlu0 %231
  %v233 = vmax.f32 %v227, %v232
  %v234 = vsub.f32 %v227, %v233
  %v235 = vmul.f32 %v234, 1.442695
  %v236 = vpow.pop %v235
  %v237 = vld [vmem:[#allocation4] sm:$0xff]
  %v238 = vmul.f32 %v236, %v237
  %240 = vset.pattern.permute.xlu0 0
  %241 = vperm.xlu0 %240, %v233
  %v242 = vpop.permute.xlu0 %241
  %v244 = vsub.f32 %v210, %v242
  %v245 = vsub.f32 %v212, %v242
  %v246 = vmul.f32 %v244, 1.442695
  %v247 = vpow.pop %v246
  %v248 = vmul.f32 %v245, 1.442695
  %v249 = vpow.pop %v248
  %v250 = vsel %vm228, %v249, 0.0
  %v251 = vadd.f32 %v247, %v250
  %252 = vadd.xlane.f32.xlu0 %v251
  %v253 = vpop.xlane.xlu0 %252
  %v254 = vadd.f32 %v238, %v253
  %vm255 = vcmask 7168
  %256 = vst.msk [vmem:[#allocation4] sm:$0xff] %vm255, %v254
  %v257 = vld [vmem:[#allocation5] sm:$0xff]
  %v258 = vsel %vm228, %v212, 0.0
  %v259 = vadd.f32 %v210, %v258
  %260 = vadd.xlane.f32.xlu0 %v259
  %v261 = vpop.xlane.xlu0 %260
  %v262 = vadd.f32 %v257, %v261
  %263 = vst.msk [vmem:[#allocation5] sm:$0xff] %vm255, %v262
  %v264 = vld [vmem:[#allocation6] sm:$0xff]
  %v265 = vld [vmem:[%s0] sm:$0xff]
  %266 = vset.pattern.permute.xlu0 0
  %267 = vperm.xlu0 %266, %v265
  %v268 = vpop.permute.xlu0 %267
  %vm269 = vcmp.eq.s32.totalorder %v225, %v268
  %vm270 = vcmp.eq.s32.totalorder %v226, %v268
  %v271 = vsel %vm269, %v210, 0.0
  %v272 = vsel %vm270, %v212, 0.0
  %v273 = vsel %vm228, %v272, 0.0
  %v274 = vadd.f32 %v271, %v273
  %275 = vadd.xlane.f32.xlu0 %v274
  %v276 = vpop.xlane.xlu0 %275
  %v277 = vadd.f32 %v264, %v276
  %278 = vst.msk [vmem:[#allocation6] sm:$0xff] %vm255, %v277
  %279 = vst.msk [vmem:[#allocation3] sm:$0xff] %vm255, %v233
  // Predicated region
  $region18: #{tpu_custom_call.1} parent=0 // pred_check
    %p280 = pneg %p41
  $region19: #{tpu_custom_call.1} parent=0 // pred_check_branch
    %282 = sbr.rel (%p280) target = $region21
  $region20: #{tpu_custom_call.1} parent=0 // pred_region
    %v283 = vld [vmem:[#allocation3] sm:$0xff]
    %284 = vst.msk [vmem:[%s3] sm:$0xff] %vm255, %v283
    %v285 = vld [vmem:[#allocation4] sm:$0xff]
    %286 = vst.msk [vmem:[%s4] sm:$0xff] %vm255, %v285
    %v287 = vld [vmem:[#allocation5] sm:$0xff]
    %288 = vst.msk [vmem:[%s5] sm:$0xff] %vm255, %v287
    %v289 = vld [vmem:[#allocation6] sm:$0xff]
    %290 = vst.msk [vmem:[%s6] sm:$0xff] %vm255, %v289
  $region21: #{tpu_custom_call.1} parent=0 // pred_fallthru
    _
  // Predicated region
  $region22: #{tpu_custom_call.1} parent=0 // pred_check
    _
  $region23: #{tpu_custom_call.1} parent=0 // pred_check_branch
    %292 = sbr.rel (0) target = $region25
  $region24: #{tpu_custom_call.1} parent=0 // pred_region
    _
  $region25: #{tpu_custom_call.1} parent=0 // pred_fallthru
    _
  // Predicated region
  $region26: #{tpu_custom_call.1} parent=0 // pred_check
    _
  $region27: #{tpu_custom_call.1} parent=0 // pred_check_branch
    %294 = sbr.rel (0) target = $region29
  $region28: #{tpu_custom_call.1} parent=0 // pred_region
    _
  $region29: #{tpu_custom_call.1} parent=0 // pred_fallthru
    _
  // Predicated region
  $region30: #{tpu_custom_call.1} parent=0 // pred_check
    _
  $region31: #{tpu_custom_call.1} parent=0 // pred_check_branch
    %296 = sbr.rel (0) target = $region33
  $region32: #{tpu_custom_call.1} parent=0 // pred_region
    _
  $region33: #{tpu_custom_call.1} parent=0 // pred_fallthru
    _
  // Predicated region
  $region34: #{tpu_custom_call.1} parent=0 // pred_check
    _
  $region35: #{tpu_custom_call.1} parent=0 // pred_check_branch
    %298 = sbr.rel (0) target = $region37
  $region36: #{tpu_custom_call.1} parent=0 // pred_region
    _
  $region37: #{tpu_custom_call.1} parent=0 // pred_fallthru
    _
  // Predicated region
  $region38: #{tpu_custom_call.1} parent=0 // pred_check
    _
  $region39: #{tpu_custom_call.1} parent=0 // pred_check_branch
    %300 = sbr.rel (0) target = $region41
  $region40: #{tpu_custom_call.1} parent=0 // pred_region
    _
  $region41: #{tpu_custom_call.1} parent=0 // pred_fallthru
    _
  // Predicated region
  $region42: #{tpu_custom_call.1} parent=0 // pred_check
    _
  $region43: #{tpu_custom_call.1} parent=0 // pred_check_branch
    %302 = sbr.rel (0) target = $region45
  $region44: #{tpu_custom_call.1} parent=0 // pred_region
    _
  $region45: #{tpu_custom_call.1} parent=0 // pred_fallthru
    _
  // Predicated region
  $region46: #{tpu_custom_call.1} parent=0 // pred_check
    _
  $region47: #{tpu_custom_call.1} parent=0 // pred_check_branch
    %304 = sbr.rel (0) target = $region49
  $region48: #{tpu_custom_call.1} parent=0 // pred_region
    _
  $region49: #{tpu_custom_call.1} parent=0 // pred_fallthru
    _
  // Predicated region
  $region50: #{tpu_custom_call.1} parent=0 // pred_check
    _
  $region51: #{tpu_custom_call.1} parent=0 // pred_check_branch
    %306 = sbr.rel (0) target = $region53
  $region52: #{tpu_custom_call.1} parent=0 // pred_region
    _
  $region53: #{tpu_custom_call.1} parent=0 // pred_fallthru
    _

</llo_original>
